<compile_context>
chip_gen: v6e
topology: v6e:2x2x1
jax: 0.10.0
libtpu: 0.0.40
codegen_flags: <defaults>
</compile_context>

<pallas_src>
import numpy as np
import jax
import jax.numpy as jnp
from jax import lax
from jax.experimental import pallas as pl
from jax.experimental.pallas import tpu as pltpu


# ---------------------------------------------------------------------------
# Kernel: one grid step == one image.
# ---------------------------------------------------------------------------
def _spps_kernel(cols1_ref, cols3_ref, sel_ref, up_ref,
                 w1_ref, w2_ref, w3_ref, b1_ref, b2_ref, b3_ref, o_ref):
    C = w1_ref.shape[0]
    L2 = up_ref.shape[0]
    n_taps = sel_ref.shape[1] // L2

    # conv1 (k=3, s=2, p=1) + folded BN + ReLU          -> (C, L1), one matmul
    y1 = jnp.dot(w1_ref[...], cols1_ref[...], preferred_element_type=jnp.float32)
    y1 = jnp.maximum(y1 + b1_ref[...], 0.0)

    # conv3 (k=3, s=8, p=1) + folded BN + ReLU          -> (C, L3), one matmul
    y3 = jnp.dot(w3_ref[...], cols3_ref[...], preferred_element_type=jnp.float32)
    y3 = jnp.maximum(y3 + b3_ref[...], 0.0)

    # conv2 (k=3, s=4, p=1) applied to y1:
    #   ONE fused gather matmul (all 9 taps at once, zero columns encode the
    #   zero padding) + static slice/concat rearrangement + ONE weight matmul.
    g = jnp.dot(y1, sel_ref[...], preferred_element_type=jnp.float32)      # (C, 9*L2)
    gr = jnp.concatenate([g[:, t * L2:(t + 1) * L2] for t in range(n_taps)],
                         axis=0)                                           # (9C, L2)
    y2 = jnp.dot(w2_ref[...], gr, preferred_element_type=jnp.float32)
    y2 = jnp.maximum(y2 + b2_ref[...], 0.0)                                # (C, L2)

    # bilinear x4 upsample (align_corners=False): one matmul per branch
    y2u = jnp.dot(y2, up_ref[...], preferred_element_type=jnp.float32)     # (C, L1)
    y3u = jnp.dot(y3, up_ref[...], preferred_element_type=jnp.float32)     # (C, L1)

    # channel concat [x1, up(x2), up(x3)] -> single full-ref store
    o_ref[...] = jnp.concatenate([y1, y2u, y3u], axis=0).astype(o_ref.dtype)


# ---------------------------------------------------------------------------
# Wrapper-side layout helpers (pure layout / constant matrices, no compute)
# ---------------------------------------------------------------------------
def _im2col(x, k, stride, pad):
    """(B, Cin, H, W) -> (B, k*k*Cin, Ho*Wo); row index = (du*k+dv)*Cin + cin."""
    B, Cin, H, W = x.shape
    Ho = (H + 2 * pad - k) // stride + 1
    Wo = (W + 2 * pad - k) // stride + 1
    xp = jnp.pad(x, ((0, 0), (0, 0), (pad, pad), (pad, pad)))
    taps = []
    for du in range(k):
        for dv in range(k):
            taps.append(xp[:, :, du:du + stride * (Ho - 1) + 1:stride,
                              dv:dv + stride * (Wo - 1) + 1:stride])
    p = jnp.stack(taps, axis=1)                        # (B, k*k, Cin, Ho, Wo)
    return p.reshape(B, k * k * Cin, Ho * Wo), Ho, Wo
    # TODO(synk): for non-toy spatial sizes, move this im2col into the kernel
    # (read x once from HBM, gather taps in-kernel) to cut input HBM traffic.


def _sel_cat_matrix(Hi, Wi, Ho, Wo, k, stride, pad):
    """Per-image 0/1 gather matrix (Hi*Wi, k*k*Ho*Wo); the 9 tap-selection
    matrices are concatenated along the output (lane) axis."""
    L1, L2 = Hi * Wi, Ho * Wo
    sel = np.zeros((L1, k * k * L2), np.float32)
    for du in range(k):
        for dv in range(k):
            t = du * k + dv
            for ho in range(Ho):
                for wo in range(Wo):
                    hi = ho * stride - pad + du
                    wi = wo * stride - pad + dv
                    if 0 <= hi < Hi and 0 <= wi < Wi:
                        sel[hi * Wi + wi, t * L2 + ho * Wo + wo] = 1.0
    return sel


def _interp_matrix(n_in, n_out):
    """1-D bilinear (align_corners=False) interpolation matrix (n_out, n_in)."""
    scale = n_in / n_out
    M = np.zeros((n_out, n_in), np.float32)
    for i in range(n_out):
        src = max((i + 0.5) * scale - 0.5, 0.0)
        i0 = min(int(np.floor(src)), n_in - 1)
        i1 = min(i0 + 1, n_in - 1)
        lam = src - i0
        M[i, i0] += 1.0 - lam
        M[i, i1] += lam
    return M


def _upsample_matrix(Hi, Wi, Ho, Wo):
    """Per-image right-multiply bilinear matrix (Hi*Wi, Ho*Wo): y_up = y @ U."""
    K = np.kron(_interp_matrix(Hi, Ho), _interp_matrix(Wi, Wo))   # (Ho*Wo, Hi*Wi)
    return np.ascontiguousarray(K.T)


def _fold_bn(Wc, bc, rm, rv, eps=1e-5):
    """Fold conv bias + eval-mode BatchNorm (affine=False) into weight/shift."""
    inv = 1.0 / jnp.sqrt(rv + eps)
    return Wc * inv[:, None, None, None], (bc - rm) * inv


# ---------------------------------------------------------------------------
# Forward
# ---------------------------------------------------------------------------
def spps_forward(x, raw_params, ksize=3):
    """x: (B, in_ch, H, W) -> (B, 3*out_ch, H//2, W//2).  (The PyTorch forward
    ignores its second argument, so it is not taken here.)"""
    (W1, b1, rm1, rv1), (W2, b2, rm2, rv2), (W3, b3, rm3, rv3) = raw_params
    B, Cin, H, W = x.shape
    C = W1.shape[0]
    K = ksize
    assert Cin == C, ("SPPS.conv2 is applied to conv1's output, so the module "
                      "only works when in_channels == out_channels")

    Wf1, bf1 = _fold_bn(W1, b1, rm1, rv1)
    Wf2, bf2 = _fold_bn(W2, b2, rm2, rv2)
    Wf3, bf3 = _fold_bn(W3, b3, rm3, rv3)

    # weight layouts matching im2col rows / gather-rearrangement rows (bf16)
    w1f = jnp.transpose(Wf1, (0, 2, 3, 1)).reshape(C, K * K * Cin).astype(jnp.bfloat16)
    w2f = jnp.transpose(Wf2, (0, 2, 3, 1)).reshape(C, K * K * C).astype(jnp.bfloat16)
    w3f = jnp.transpose(Wf3, (0, 2, 3, 1)).reshape(C, K * K * Cin).astype(jnp.bfloat16)

    # conv1 / conv3 patches (wrapper-side layout only), bf16 to halve DMA bytes
    cols1, H1, W1o = _im2col(x, K, 2, 1)
    cols3, H3, W3o = _im2col(x, K, 8, 1)
    cols1 = cols1.astype(jnp.bfloat16)
    cols3 = cols3.astype(jnp.bfloat16)

    H2 = (H1 + 2 - K) // 4 + 1
    W2o = (W1o + 2 - K) // 4 + 1
    assert (4 * H2, 4 * W2o) == (H1, W1o) and (4 * H3, 4 * W3o) == (H1, W1o), \
        "upsampled branches must match conv1's spatial size for the concat"

    L1, L2, L3 = H1 * W1o, H2 * W2o, H3 * W3o

    # per-image constants (batch factored out; exact in bf16 since entries are
    # 0/1 and k/64 bilinear weights)
    sel = jnp.asarray(_sel_cat_matrix(H1, W1o, H2, W2o, K, 4, 1), jnp.bfloat16)  # (L1, 9*L2)
    up = jnp.asarray(_upsample_matrix(H2, W2o, H1, W1o), jnp.bfloat16)           # (L2, L1)

    flops = 2 * B * (C * (K * K * Cin) * L1 + C * (K * K * Cin) * L3
                     + C * L1 * (K * K * L2) + C * (K * K * C) * L2
                     + 2 * C * L2 * L1)
    bytes_accessed = 2 * (cols1.size + cols3.size + sel.size + up.size
                          + w1f.size + w2f.size + w3f.size) \
        + 3 * C * 4 + B * 3 * C * L1 * 4

    out = pl.pallas_call(
        _spps_kernel,
        out_shape=jax.ShapeDtypeStruct((B, 3 * C, L1), jnp.float32),
        grid=(B,),
        in_specs=[
            pl.BlockSpec((None, K * K * Cin, L1), lambda b: (b, 0, 0)),   # cols1
            pl.BlockSpec((None, K * K * Cin, L3), lambda b: (b, 0, 0)),   # cols3
            pl.BlockSpec((L1, K * K * L2), lambda b: (0, 0)),             # sel (shared)
            pl.BlockSpec((L2, L1), lambda b: (0, 0)),                     # up (shared)
            pl.BlockSpec((C, K * K * Cin), lambda b: (0, 0)),             # w1
            pl.BlockSpec((C, K * K * C), lambda b: (0, 0)),               # w2
            pl.BlockSpec((C, K * K * Cin), lambda b: (0, 0)),             # w3
            pl.BlockSpec((C, 1), lambda b: (0, 0)),                       # b1
            pl.BlockSpec((C, 1), lambda b: (0, 0)),                       # b2
            pl.BlockSpec((C, 1), lambda b: (0, 0)),                       # b3
        ],
        out_specs=pl.BlockSpec((None, 3 * C, L1), lambda b: (b, 0, 0)),
        compiler_params=pltpu.CompilerParams(dimension_semantics=("parallel",)),
        cost_estimate=pl.CostEstimate(flops=int(flops), transcendentals=0,
                                      bytes_accessed=int(bytes_accessed)),
    )(cols1, cols3, sel, up, w1f, w2f, w3f,
      bf1[:, None], bf2[:, None], bf3[:, None])

    # metadata-only reshape to NCHW (no data movement)
    return out.reshape(B, 3 * C, H1, W1o)


# ---------------------------------------------------------------------------
# Synthetic params + pure-JAX reference
# ---------------------------------------------------------------------------
def init_raw_params(key, in_ch, out_ch, ksize=3):
    ks = jax.random.split(key, 12)

    def one(kw, kb, km, kv, cin, cout):
        Wc = 0.1 * jax.random.normal(kw, (cout, cin, ksize, ksize), jnp.float32)
        bc = 0.1 * jax.random.normal(kb, (cout,), jnp.float32)
        rm = 0.1 * jax.random.normal(km, (cout,), jnp.float32)
        rv = 1.0 + 0.1 * jnp.abs(jax.random.normal(kv, (cout,), jnp.float32))
        return Wc, bc, rm, rv

    p1 = one(ks[0], ks[1], ks[2], ks[3], in_ch, out_ch)
    p2 = one(ks[4], ks[5], ks[6], ks[7], out_ch, out_ch)   # conv2 consumes conv1's output
    p3 = one(ks[8], ks[9], ks[10], ks[11], in_ch, out_ch)
    return p1, p2, p3


def reference(x, raw_params, eps=1e-5):
    (W1, b1, rm1, rv1), (W2, b2, rm2, rv2), (W3, b3, rm3, rv3) = raw_params

    def block(inp, Wc, bc, rm, rv, stride):
        y = lax.conv_general_dilated(inp, Wc, (stride, stride), ((1, 1), (1, 1)),
                                     dimension_numbers=('NCHW', 'OIHW', 'NCHW'))
        y = y + bc[None, :, None, None]
        y = (y - rm[None, :, None, None]) / jnp.sqrt(rv[None, :, None, None] + eps)
        return jnp.maximum(y, 0.0)

    x1 = block(x, W1, b1, rm1, rv1, 2)
    x2 = block(x1, W2, b2, rm2, rv2, 4)
    x3 = block(x, W3, b3, rm3, rv3, 8)
    B, C = x2.shape[:2]
    x2u = jax.image.resize(x2, (B, C, x2.shape[2] * 4, x2.shape[3] * 4), 'bilinear')
    x3u = jax.image.resize(x3, (B, C, x3.shape[2] * 4, x3.shape[3] * 4), 'bilinear')
    return jnp.concatenate([x1, x2u, x3u], axis=1)


if __name__ == "__main__":
    B, in_ch, out_ch, H, W = 2, 4, 4, 16, 16   # conv2(x1) requires in_ch == out_ch

    key = jax.random.PRNGKey(0)
    kx, kp = jax.random.split(key)
    x = jax.random.normal(kx, (B, in_ch, H, W), jnp.float32)
    raw = init_raw_params(kp, in_ch, out_ch)

    out = spps_forward(x, raw)
    out = jax.block_until_ready(out)

    ref = reference(x, raw)
    assert out.shape == (B, 3 * out_ch, H // 2, W // 2)
    # tolerance reflects bf16 quantization of the input patches / folded weights
    # (accumulation is f32; selection and bilinear constants are exact in bf16)
    np.testing.assert_allclose(np.asarray(out), np.asarray(ref), rtol=3e-2, atol=3e-2)
    print("KERNEL_OK")
</pallas_src>

<mosaic_0001>
module attributes {stable_mosaic.version = 11 : i64} {
  func.func @_spps_kernel(%arg0: i32, %arg1: memref<1x36x64xbf16, #tpu.memory_space<vmem>>, %arg2: memref<1x36x4xbf16, #tpu.memory_space<vmem>>, %arg3: memref<64x36xbf16, #tpu.memory_space<vmem>>, %arg4: memref<4x64xbf16, #tpu.memory_space<vmem>>, %arg5: memref<4x36xbf16, #tpu.memory_space<vmem>>, %arg6: memref<4x36xbf16, #tpu.memory_space<vmem>>, %arg7: memref<4x36xbf16, #tpu.memory_space<vmem>>, %arg8: memref<4x1xf32, #tpu.memory_space<vmem>>, %arg9: memref<4x1xf32, #tpu.memory_space<vmem>>, %arg10: memref<4x1xf32, #tpu.memory_space<vmem>>, %arg11: memref<1x12x64xf32, #tpu.memory_space<vmem>>) attributes {dimension_semantics = [#tpu.dimension_semantics<parallel>], iteration_bounds = array<i64: 2>, scalar_prefetch = 0 : i64, scratch_operands = 0 : i64, tpu.core_type = #tpu.core_type<tc>, window_params = [{transform_indices = @transform_0, window_bounds = array<i64: 1, 36, 64>}, {transform_indices = @transform_1, window_bounds = array<i64: 1, 36, 4>}, {pipeline_mode = #tpu.pipeline_mode<synchronous>, transform_indices = @transform_2, window_bounds = array<i64: 64, 36>}, {pipeline_mode = #tpu.pipeline_mode<synchronous>, transform_indices = @transform_3, window_bounds = array<i64: 4, 64>}, {pipeline_mode = #tpu.pipeline_mode<synchronous>, transform_indices = @transform_4, window_bounds = array<i64: 4, 36>}, {pipeline_mode = #tpu.pipeline_mode<synchronous>, transform_indices = @transform_5, window_bounds = array<i64: 4, 36>}, {pipeline_mode = #tpu.pipeline_mode<synchronous>, transform_indices = @transform_6, window_bounds = array<i64: 4, 36>}, {pipeline_mode = #tpu.pipeline_mode<synchronous>, transform_indices = @transform_7, window_bounds = array<i64: 4, 1>}, {pipeline_mode = #tpu.pipeline_mode<synchronous>, transform_indices = @transform_8, window_bounds = array<i64: 4, 1>}, {pipeline_mode = #tpu.pipeline_mode<synchronous>, transform_indices = @transform_9, window_bounds = array<i64: 4, 1>}, {transform_indices = @transform_10, window_bounds = array<i64: 1, 12, 64>}]} {
    %c0 = arith.constant 0 : index
    %c0_0 = arith.constant 0 : index
    %0 = vector.load %arg5[%c0, %c0_0] : memref<4x36xbf16, #tpu.memory_space<vmem>>, vector<4x36xbf16>
    %c0_1 = arith.constant 0 : index
    %c0_2 = arith.constant 0 : index
    %c0_3 = arith.constant 0 : index
    %1 = vector.load %arg1[%c0_1, %c0_2, %c0_3] : memref<1x36x64xbf16, #tpu.memory_space<vmem>>, vector<1x36x64xbf16>
    %2 = vector.shape_cast %1 : vector<1x36x64xbf16> to vector<36x64xbf16>
    %cst = arith.constant dense<0.000000e+00> : vector<4x64xf32>
    %3 = tpu.matmul %0, %2, %cst {dimension_numbers = #tpu.dot_dimension_numbers<[1], [0], [0], [1], [0, 0, 1, 1], [], []>} : vector<4x36xbf16>, vector<36x64xbf16>, vector<4x64xf32> -> vector<4x64xf32>
    %c0_4 = arith.constant 0 : index
    %c0_5 = arith.constant 0 : index
    %4 = vector.load %arg8[%c0_4, %c0_5] : memref<4x1xf32, #tpu.memory_space<vmem>>, vector<4x1xf32>
    %5 = vector.broadcast %4 : vector<4x1xf32> to vector<4x64xf32>
    %6 = arith.addf %3, %5 : vector<4x64xf32>
    %cst_6 = arith.constant 0.000000e+00 : f32
    %7 = vector.broadcast %cst_6 : f32 to vector<4x64xf32>
    %8 = arith.maximumf %6, %7 : vector<4x64xf32>
    %c0_7 = arith.constant 0 : index
    %c0_8 = arith.constant 0 : index
    %9 = vector.load %arg7[%c0_7, %c0_8] : memref<4x36xbf16, #tpu.memory_space<vmem>>, vector<4x36xbf16>
    %c0_9 = arith.constant 0 : index
    %c0_10 = arith.constant 0 : index
    %c0_11 = arith.constant 0 : index
    %10 = vector.load %arg2[%c0_9, %c0_10, %c0_11] : memref<1x36x4xbf16, #tpu.memory_space<vmem>>, vector<1x36x4xbf16>
    %11 = vector.shape_cast %10 : vector<1x36x4xbf16> to vector<36x4xbf16>
    %cst_12 = arith.constant dense<0.000000e+00> : vector<4x4xf32>
    %12 = tpu.matmul %9, %11, %cst_12 {dimension_numbers = #tpu.dot_dimension_numbers<[1], [0], [0], [1], [0, 0, 1, 1], [], []>} : vector<4x36xbf16>, vector<36x4xbf16>, vector<4x4xf32> -> vector<4x4xf32>
    %c0_13 = arith.constant 0 : index
    %c0_14 = arith.constant 0 : index
    %13 = vector.load %arg10[%c0_13, %c0_14] : memref<4x1xf32, #tpu.memory_space<vmem>>, vector<4x1xf32>
    %14 = vector.broadcast %13 : vector<4x1xf32> to vector<4x4xf32>
    %15 = arith.addf %12, %14 : vector<4x4xf32>
    %cst_15 = arith.constant 0.000000e+00 : f32
    %16 = vector.broadcast %cst_15 : f32 to vector<4x4xf32>
    %17 = arith.maximumf %15, %16 : vector<4x4xf32>
    %c0_16 = arith.constant 0 : index
    %c0_17 = arith.constant 0 : index
    %18 = vector.load %arg3[%c0_16, %c0_17] : memref<64x36xbf16, #tpu.memory_space<vmem>>, vector<64x36xbf16>
    %cst_18 = arith.constant dense<0.000000e+00> : vector<4x36xf32>
    %19 = tpu.matmul %8, %18, %cst_18 {dimension_numbers = #tpu.dot_dimension_numbers<[1], [0], [0], [1], [0, 0, 1, 1], [], []>} : vector<4x64xf32>, vector<64x36xbf16>, vector<4x36xf32> -> vector<4x36xf32>
    %20 = vector.extract_strided_slice %19 {offsets = [0, 0], sizes = [4, 4], strides = [1, 1]} : vector<4x36xf32> to vector<4x4xf32>
    %21 = vector.extract_strided_slice %19 {offsets = [0, 4], sizes = [4, 4], strides = [1, 1]} : vector<4x36xf32> to vector<4x4xf32>
    %22 = vector.extract_strided_slice %19 {offsets = [0, 8], sizes = [4, 4], strides = [1, 1]} : vector<4x36xf32> to vector<4x4xf32>
    %23 = vector.extract_strided_slice %19 {offsets = [0, 12], sizes = [4, 4], strides = [1, 1]} : vector<4x36xf32> to vector<4x4xf32>
    %24 = vector.extract_strided_slice %19 {offsets = [0, 16], sizes = [4, 4], strides = [1, 1]} : vector<4x36xf32> to vector<4x4xf32>
    %25 = vector.extract_strided_slice %19 {offsets = [0, 20], sizes = [4, 4], strides = [1, 1]} : vector<4x36xf32> to vector<4x4xf32>
    %26 = vector.extract_strided_slice %19 {offsets = [0, 24], sizes = [4, 4], strides = [1, 1]} : vector<4x36xf32> to vector<4x4xf32>
    %27 = vector.extract_strided_slice %19 {offsets = [0, 28], sizes = [4, 4], strides = [1, 1]} : vector<4x36xf32> to vector<4x4xf32>
    %28 = vector.extract_strided_slice %19 {offsets = [0, 32], sizes = [4, 4], strides = [1, 1]} : vector<4x36xf32> to vector<4x4xf32>
    %29 = tpu.concatenate %20, %21, %22, %23, %24, %25, %26, %27, %28 in 0 : vector<4x4xf32>, vector<4x4xf32>, vector<4x4xf32>, vector<4x4xf32>, vector<4x4xf32>, vector<4x4xf32>, vector<4x4xf32>, vector<4x4xf32>, vector<4x4xf32> -> vector<36x4xf32>
    %c0_19 = arith.constant 0 : index
    %c0_20 = arith.constant 0 : index
    %30 = vector.load %arg6[%c0_19, %c0_20] : memref<4x36xbf16, #tpu.memory_space<vmem>>, vector<4x36xbf16>
    %cst_21 = arith.constant dense<0.000000e+00> : vector<4x4xf32>
    %31 = tpu.matmul %30, %29, %cst_21 {dimension_numbers = #tpu.dot_dimension_numbers<[1], [0], [0], [1], [0, 0, 1, 1], [], []>} : vector<4x36xbf16>, vector<36x4xf32>, vector<4x4xf32> -> vector<4x4xf32>
    %c0_22 = arith.constant 0 : index
    %c0_23 = arith.constant 0 : index
    %32 = vector.load %arg9[%c0_22, %c0_23] : memref<4x1xf32, #tpu.memory_space<vmem>>, vector<4x1xf32>
    %33 = vector.broadcast %32 : vector<4x1xf32> to vector<4x4xf32>
    %34 = arith.addf %31, %33 : vector<4x4xf32>
    %cst_24 = arith.constant 0.000000e+00 : f32
    %35 = vector.broadcast %cst_24 : f32 to vector<4x4xf32>
    %36 = arith.maximumf %34, %35 : vector<4x4xf32>
    %c0_25 = arith.constant 0 : index
    %c0_26 = arith.constant 0 : index
    %37 = vector.load %arg4[%c0_25, %c0_26] : memref<4x64xbf16, #tpu.memory_space<vmem>>, vector<4x64xbf16>
    %cst_27 = arith.constant dense<0.000000e+00> : vector<4x64xf32>
    %38 = tpu.matmul %36, %37, %cst_27 {dimension_numbers = #tpu.dot_dimension_numbers<[1], [0], [0], [1], [0, 0, 1, 1], [], []>} : vector<4x4xf32>, vector<4x64xbf16>, vector<4x64xf32> -> vector<4x64xf32>
    %c0_28 = arith.constant 0 : index
    %c0_29 = arith.constant 0 : index
    %39 = vector.load %arg4[%c0_28, %c0_29] : memref<4x64xbf16, #tpu.memory_space<vmem>>, vector<4x64xbf16>
    %cst_30 = arith.constant dense<0.000000e+00> : vector<4x64xf32>
    %40 = tpu.matmul %17, %39, %cst_30 {dimension_numbers = #tpu.dot_dimension_numbers<[1], [0], [0], [1], [0, 0, 1, 1], [], []>} : vector<4x4xf32>, vector<4x64xbf16>, vector<4x64xf32> -> vector<4x64xf32>
    %41 = tpu.concatenate %8, %38, %40 in 0 : vector<4x64xf32>, vector<4x64xf32>, vector<4x64xf32> -> vector<12x64xf32>
    %c0_31 = arith.constant 0 : index
    %c0_32 = arith.constant 0 : index
    %c0_33 = arith.constant 0 : index
    %42 = vector.load %arg11[%c0_31, %c0_32, %c0_33] : memref<1x12x64xf32, #tpu.memory_space<vmem>>, vector<1x12x64xf32>
    %43 = vector.shape_cast %42 : vector<1x12x64xf32> to vector<12x64xf32>
    %44 = vector.shape_cast %41 : vector<12x64xf32> to vector<1x12x64xf32>
    tpu.vector_store %arg11[%c0_31, %c0_32, %c0_33], %44 {strides = array<i32>} : memref<1x12x64xf32, #tpu.memory_space<vmem>>, vector<1x12x64xf32>,
    return
  }
  func.func @transform_0(%arg0: i32) -> (i32, i32, i32) {
    %c0_i32 = arith.constant 0 : i32
    %c0_i32_0 = arith.constant 0 : i32
    %c0_i32_1 = arith.constant 0 : i32
    return %arg0, %c0_i32, %c0_i32_0 : i32, i32, i32
  }
  func.func @transform_1(%arg0: i32) -> (i32, i32, i32) {
    %c0_i32 = arith.constant 0 : i32
    %c0_i32_0 = arith.constant 0 : i32
    %c0_i32_1 = arith.constant 0 : i32
    return %arg0, %c0_i32, %c0_i32_0 : i32, i32, i32
  }
  func.func @transform_2(%arg0: i32) -> (i32, i32) {
    %c0_i32 = arith.constant 0 : i32
    %c0_i32_0 = arith.constant 0 : i32
    %c0_i32_1 = arith.constant 0 : i32
    return %c0_i32, %c0_i32_0 : i32, i32
  }
  func.func @transform_3(%arg0: i32) -> (i32, i32) {
    %c0_i32 = arith.constant 0 : i32
    %c0_i32_0 = arith.constant 0 : i32
    %c0_i32_1 = arith.constant 0 : i32
    return %c0_i32, %c0_i32_0 : i32, i32
  }
  func.func @transform_4(%arg0: i32) -> (i32, i32) {
    %c0_i32 = arith.constant 0 : i32
    %c0_i32_0 = arith.constant 0 : i32
    %c0_i32_1 = arith.constant 0 : i32
    return %c0_i32, %c0_i32_0 : i32, i32
  }
  func.func @transform_5(%arg0: i32) -> (i32, i32) {
    %c0_i32 = arith.constant 0 : i32
    %c0_i32_0 = arith.constant 0 : i32
    %c0_i32_1 = arith.constant 0 : i32
    return %c0_i32, %c0_i32_0 : i32, i32
  }
  func.func @transform_6(%arg0: i32) -> (i32, i32) {
    %c0_i32 = arith.constant 0 : i32
    %c0_i32_0 = arith.constant 0 : i32
    %c0_i32_1 = arith.constant 0 : i32
    return %c0_i32, %c0_i32_0 : i32, i32
  }
  func.func @transform_7(%arg0: i32) -> (i32, i32) {
    %c0_i32 = arith.constant 0 : i32
    %c0_i32_0 = arith.constant 0 : i32
    %c0_i32_1 = arith.constant 0 : i32
    return %c0_i32, %c0_i32_0 : i32, i32
  }
  func.func @transform_8(%arg0: i32) -> (i32, i32) {
    %c0_i32 = arith.constant 0 : i32
    %c0_i32_0 = arith.constant 0 : i32
    %c0_i32_1 = arith.constant 0 : i32
    return %c0_i32, %c0_i32_0 : i32, i32
  }
  func.func @transform_9(%arg0: i32) -> (i32, i32) {
    %c0_i32 = arith.constant 0 : i32
    %c0_i32_0 = arith.constant 0 : i32
    %c0_i32_1 = arith.constant 0 : i32
    return %c0_i32, %c0_i32_0 : i32, i32
  }
  func.func @transform_10(%arg0: i32) -> (i32, i32, i32) {
    %c0_i32 = arith.constant 0 : i32
    %c0_i32_0 = arith.constant 0 : i32
    %c0_i32_1 = arith.constant 0 : i32
    return %arg0, %c0_i32, %c0_i32_0 : i32, i32, i32
  }
}

</mosaic_0001>

<llo_original>
// kernel: tpu_custom_call.1
$region0: #{tpu_custom_call.1}
  #allocation0 [shape = 'u32[]', space=smem, size = 0x4, offset = 0x4, fixed_abs, tag = 'smem constant byte address 0x4 - core index']
  #allocation1 [shape = 'u32[144,128]{1,0:T(1,128)}', space=vmem, size = 0x12000, scoped, tag = 'internal scratch']
  %s0 = inlined_call_operand.vmem [shape: bf16[2,36,64], index: 0, kind: input, shape index: {}]
  %s1 = inlined_call_operand.vmem [shape: bf16[2,36,4], index: 1, kind: input, shape index: {}]
  %s2 = inlined_call_operand.vmem [shape: bf16[64,36], index: 2, kind: input, shape index: {}]
  %s3 = inlined_call_operand.vmem [shape: bf16[4,64], index: 3, kind: input, shape index: {}]
  %s4 = inlined_call_operand.vmem [shape: bf16[4,36], index: 4, kind: input, shape index: {}]
  %s5 = inlined_call_operand.vmem [shape: bf16[4,36], index: 5, kind: input, shape index: {}]
  %s6 = inlined_call_operand.vmem [shape: bf16[4,36], index: 6, kind: input, shape index: {}]
  %s7 = inlined_call_operand.vmem [shape: f32[4,1], index: 7, kind: input, shape index: {}]
  %s8 = inlined_call_operand.vmem [shape: f32[4,1], index: 8, kind: input, shape index: {}]
  %s9 = inlined_call_operand.vmem [shape: f32[4,1], index: 9, kind: input, shape index: {}]
  %s10 = inlined_call_operand.vmem [shape: f32[2,12,64], index: 10, kind: output, shape index: {}]
  %s11 = sld [smem:[#allocation0]]
  $region73: #{tpu_custom_call.1} parent=0
    _
  %s13 = ssub.s32 1, %s11
  %s14 = scalar_select 0, %s13, %s11
  loop: start=0, step=1, limit=4
  $region2: #{tpu_custom_call.1} parent=0 // loop_pre_header
    _
  $region3: #{tpu_custom_call.1} parent=0 // loop_header
    %s16 = sphi 0, %s20
    %p17 = scmp.ge.s32.totalorder %s16, 4
    %s26 = sphi 0, %s28
    %s29 = sphi 0, %s26
    %s30 = sphi 0, %s29
    %s46 = sphi 0, %s30
    %s52 = sphi 0, %s54
    %s55 = sphi 0, %s52
    %s56 = sphi 0, %s55
    %s72 = sphi 0, %s56
    %s76 = sphi 0, %s76
    %s78 = sphi 0, %s76
    %s79 = sphi 0, %s78
    %s93 = sphi 0, %s79
    %s97 = sphi 0, %s97
    %s99 = sphi 0, %s97
    %s100 = sphi 0, %s99
    %s114 = sphi 0, %s100
    %s118 = sphi 0, %s118
    %s120 = sphi 0, %s118
    %s121 = sphi 0, %s120
    %s135 = sphi 0, %s121
    %s139 = sphi 0, %s139
    %s141 = sphi 0, %s139
    %s142 = sphi 0, %s141
    %s156 = sphi 0, %s142
    %s160 = sphi 0, %s160
    %s162 = sphi 0, %s160
    %s163 = sphi 0, %s162
    %s177 = sphi 0, %s163
    %s181 = sphi 0, %s181
    %s183 = sphi 0, %s181
    %s184 = sphi 0, %s183
    %s198 = sphi 0, %s184
    %s202 = sphi 0, %s202
    %s204 = sphi 0, %s202
    %s205 = sphi 0, %s204
    %s219 = sphi 0, %s205
    %s223 = sphi 0, %s223
    %s225 = sphi 0, %s223
    %s226 = sphi 0, %s225
    %s240 = sphi 0, %s226
    %s246 = sphi 0, %s248
    %s249 = sphi 0, %s246
    %s250 = sphi 0, %s249
    %s266 = sphi 0, %s250
  $region4: #{tpu_custom_call.1} parent=0 // loop_header_branch
    %19 = sbr.rel (%p17) target = $region8
  $region5: #{tpu_custom_call.1} parent=0 // loop_body
    %s21 = ssub.s32 %s16, 1
    %s22 = ssub.s32 %s16, 2
    %s23 = sadd.s32 %s16, 1
    %s24 = ssub.s32 %s16, %s23
    %p25 = scmp.eq.s32.totalorder %s24, 0
    %s27 = sadd.s32 %s26, 1
    %s28 = scalar_select %p25, %s26, %s27
    %p31 = pneg %p25
    %p32 = scmp.eq.s32.totalorder %s16, 1
    %p33 = por %p31, %p32
    %p34 = scmp.ne.s32.totalorder %s26, %s29
    %p35 = scmp.eq.s32.totalorder %s16, 0
    %p36 = por %p34, %p35
    %p37 = scmp.ne.s32.totalorder %s26, %s29
    %p38 = scmp.eq.s32.totalorder %s21, 1
    %p39 = por %p37, %p38
    %p40 = scmp.ne.s32.totalorder %s29, %s30
    %p41 = scmp.eq.s32.totalorder %s21, 0
    %p42 = por %p40, %p41
    %p43 = scmp.ne.s32.totalorder %s29, %s30
    %p44 = scmp.eq.s32.totalorder %s22, 1
    %p45 = por %p43, %p44
    %p47 = scmp.ne.s32.totalorder %s30, %s46
    %p48 = scmp.eq.s32.totalorder %s22, 0
    %p49 = por %p47, %p48
    %s50 = ssub.s32 %s16, %s23
    %p51 = scmp.eq.s32.totalorder %s50, 0
    %s53 = sadd.s32 %s52, 1
    %s54 = scalar_select %p51, %s52, %s53
    %p57 = pneg %p51
    %p58 = scmp.eq.s32.totalorder %s16, 1
    %p59 = por %p57, %p58
    %p60 = scmp.ne.s32.totalorder %s52, %s55
    %p61 = scmp.eq.s32.totalorder %s16, 0
    %p62 = por %p60, %p61
    %p63 = scmp.ne.s32.totalorder %s52, %s55
    %p64 = scmp.eq.s32.totalorder %s21, 1
    %p65 = por %p63, %p64
    %p66 = scmp.ne.s32.totalorder %s55, %s56
    %p67 = scmp.eq.s32.totalorder %s21, 0
    %p68 = por %p66, %p67
    %p69 = scmp.ne.s32.totalorder %s55, %s56
    %p70 = scmp.eq.s32.totalorder %s22, 1
    %p71 = por %p69, %p70
    %p73 = scmp.ne.s32.totalorder %s56, %s72
    %p74 = scmp.eq.s32.totalorder %s22, 0
    %p75 = por %p73, %p74
    %s77 = sadd.s32 %s76, 1
    %p80 = scmp.eq.s32.totalorder %s16, 1
    %p81 = scmp.ne.s32.totalorder %s76, %s78
    %p82 = scmp.eq.s32.totalorder %s16, 0
    %p83 = por %p81, %p82
    %p84 = scmp.ne.s32.totalorder %s76, %s78
    %p85 = scmp.eq.s32.totalorder %s21, 1
    %p86 = por %p84, %p85
    %p87 = scmp.ne.s32.totalorder %s78, %s79
    %p88 = scmp.eq.s32.totalorder %s21, 0
    %p89 = por %p87, %p88
    %p90 = scmp.ne.s32.totalorder %s78, %s79
    %p91 = scmp.eq.s32.totalorder %s22, 1
    %p92 = por %p90, %p91
    %p94 = scmp.ne.s32.totalorder %s79, %s93
    %p95 = scmp.eq.s32.totalorder %s22, 0
    %p96 = por %p94, %p95
    %s98 = sadd.s32 %s97, 1
    %p101 = scmp.eq.s32.totalorder %s16, 1
    %p102 = scmp.ne.s32.totalorder %s97, %s99
    %p103 = scmp.eq.s32.totalorder %s16, 0
    %p104 = por %p102, %p103
    %p105 = scmp.ne.s32.totalorder %s97, %s99
    %p106 = scmp.eq.s32.totalorder %s21, 1
    %p107 = por %p105, %p106
    %p108 = scmp.ne.s32.totalorder %s99, %s100
    %p109 = scmp.eq.s32.totalorder %s21, 0
    %p110 = por %p108, %p109
    %p111 = scmp.ne.s32.totalorder %s99, %s100
    %p112 = scmp.eq.s32.totalorder %s22, 1
    %p113 = por %p111, %p112
    %p115 = scmp.ne.s32.totalorder %s100, %s114
    %p116 = scmp.eq.s32.totalorder %s22, 0
    %p117 = por %p115, %p116
    %s119 = sadd.s32 %s118, 1
    %p122 = scmp.eq.s32.totalorder %s16, 1
    %p123 = scmp.ne.s32.totalorder %s118, %s120
    %p124 = scmp.eq.s32.totalorder %s16, 0
    %p125 = por %p123, %p124
    %p126 = scmp.ne.s32.totalorder %s118, %s120
    %p127 = scmp.eq.s32.totalorder %s21, 1
    %p128 = por %p126, %p127
    %p129 = scmp.ne.s32.totalorder %s120, %s121
    %p130 = scmp.eq.s32.totalorder %s21, 0
    %p131 = por %p129, %p130
    %p132 = scmp.ne.s32.totalorder %s120, %s121
    %p133 = scmp.eq.s32.totalorder %s22, 1
    %p134 = por %p132, %p133
    %p136 = scmp.ne.s32.totalorder %s121, %s135
    %p137 = scmp.eq.s32.totalorder %s22, 0
    %p138 = por %p136, %p137
    %s140 = sadd.s32 %s139, 1
    %p143 = scmp.eq.s32.totalorder %s16, 1
    %p144 = scmp.ne.s32.totalorder %s139, %s141
    %p145 = scmp.eq.s32.totalorder %s16, 0
    %p146 = por %p144, %p145
    %p147 = scmp.ne.s32.totalorder %s139, %s141
    %p148 = scmp.eq.s32.totalorder %s21, 1
    %p149 = por %p147, %p148
    %p150 = scmp.ne.s32.totalorder %s141, %s142
    %p151 = scmp.eq.s32.totalorder %s21, 0
    %p152 = por %p150, %p151
    %p153 = scmp.ne.s32.totalorder %s141, %s142
    %p154 = scmp.eq.s32.totalorder %s22, 1
    %p155 = por %p153, %p154
    %p157 = scmp.ne.s32.totalorder %s142, %s156
    %p158 = scmp.eq.s32.totalorder %s22, 0
    %p159 = por %p157, %p158
    %s161 = sadd.s32 %s160, 1
    %p164 = scmp.eq.s32.totalorder %s16, 1
    %p165 = scmp.ne.s32.totalorder %s160, %s162
    %p166 = scmp.eq.s32.totalorder %s16, 0
    %p167 = por %p165, %p166
    %p168 = scmp.ne.s32.totalorder %s160, %s162
    %p169 = scmp.eq.s32.totalorder %s21, 1
    %p170 = por %p168, %p169
    %p171 = scmp.ne.s32.totalorder %s162, %s163
    %p172 = scmp.eq.s32.totalorder %s21, 0
    %p173 = por %p171, %p172
    %p174 = scmp.ne.s32.totalorder %s162, %s163
    %p175 = scmp.eq.s32.totalorder %s22, 1
    %p176 = por %p174, %p175
    %p178 = scmp.ne.s32.totalorder %s163, %s177
    %p179 = scmp.eq.s32.totalorder %s22, 0
    %p180 = por %p178, %p179
    %s182 = sadd.s32 %s181, 1
    %p185 = scmp.eq.s32.totalorder %s16, 1
    %p186 = scmp.ne.s32.totalorder %s181, %s183
    %p187 = scmp.eq.s32.totalorder %s16, 0
    %p188 = por %p186, %p187
    %p189 = scmp.ne.s32.totalorder %s181, %s183
    %p190 = scmp.eq.s32.totalorder %s21, 1
    %p191 = por %p189, %p190
    %p192 = scmp.ne.s32.totalorder %s183, %s184
    %p193 = scmp.eq.s32.totalorder %s21, 0
    %p194 = por %p192, %p193
    %p195 = scmp.ne.s32.totalorder %s183, %s184
    %p196 = scmp.eq.s32.totalorder %s22, 1
    %p197 = por %p195, %p196
    %p199 = scmp.ne.s32.totalorder %s184, %s198
    %p200 = scmp.eq.s32.totalorder %s22, 0
    %p201 = por %p199, %p200
    %s203 = sadd.s32 %s202, 1
    %p206 = scmp.eq.s32.totalorder %s16, 1
    %p207 = scmp.ne.s32.totalorder %s202, %s204
    %p208 = scmp.eq.s32.totalorder %s16, 0
    %p209 = por %p207, %p208
    %p210 = scmp.ne.s32.totalorder %s202, %s204
    %p211 = scmp.eq.s32.totalorder %s21, 1
    %p212 = por %p210, %p211
    %p213 = scmp.ne.s32.totalorder %s204, %s205
    %p214 = scmp.eq.s32.totalorder %s21, 0
    %p215 = por %p213, %p214
    %p216 = scmp.ne.s32.totalorder %s204, %s205
    %p217 = scmp.eq.s32.totalorder %s22, 1
    %p218 = por %p216, %p217
    %p220 = scmp.ne.s32.totalorder %s205, %s219
    %p221 = scmp.eq.s32.totalorder %s22, 0
    %p222 = por %p220, %p221
    %s224 = sadd.s32 %s223, 1
    %p227 = scmp.eq.s32.totalorder %s16, 1
    %p228 = scmp.ne.s32.totalorder %s223, %s225
    %p229 = scmp.eq.s32.totalorder %s16, 0
    %p230 = por %p228, %p229
    %p231 = scmp.ne.s32.totalorder %s223, %s225
    %p232 = scmp.eq.s32.totalorder %s21, 1
    %p233 = por %p231, %p232
    %p234 = scmp.ne.s32.totalorder %s225, %s226
    %p235 = scmp.eq.s32.totalorder %s21, 0
    %p236 = por %p234, %p235
    %p237 = scmp.ne.s32.totalorder %s225, %s226
    %p238 = scmp.eq.s32.totalorder %s22, 1
    %p239 = por %p237, %p238
    %p241 = scmp.ne.s32.totalorder %s226, %s240
    %p242 = scmp.eq.s32.totalorder %s22, 0
    %p243 = por %p241, %p242
    %s244 = ssub.s32 %s16, %s23
    %p245 = scmp.eq.s32.totalorder %s244, 0
    %s247 = sadd.s32 %s246, 1
    %s248 = scalar_select %p245, %s246, %s247
    %p251 = pneg %p245
    %p252 = scmp.eq.s32.totalorder %s16, 1
    %p253 = por %p251, %p252
    %p254 = scmp.ne.s32.totalorder %s246, %s249
    %p255 = scmp.eq.s32.totalorder %s16, 0
    %p256 = por %p254, %p255
    %p257 = scmp.ne.s32.totalorder %s246, %s249
    %p258 = scmp.eq.s32.totalorder %s21, 1
    %p259 = por %p257, %p258
    %p260 = scmp.ne.s32.totalorder %s249, %s250
    %p261 = scmp.eq.s32.totalorder %s21, 0
    %p262 = por %p260, %p261
    %p263 = scmp.ne.s32.totalorder %s249, %s250
    %p264 = scmp.eq.s32.totalorder %s22, 1
    %p265 = por %p263, %p264
    %p267 = scmp.ne.s32.totalorder %s250, %s266
    %p268 = scmp.eq.s32.totalorder %s22, 0
    %p269 = por %p267, %p268
    %p270 = scmp.le.s32.totalorder 1, %s16
    %p271 = scmp.lt.s32.totalorder %s16, 3
    %p272 = pnand %p270, %p271
    %p273 = pneg %p272
    // Predicated region
    $region9: #{tpu_custom_call.1} parent=5 // pred_check
      _
    $region10: #{tpu_custom_call.1} parent=5 // pred_check_branch
      %275 = sbr.rel (%p272) target = $region12
    $region11: #{tpu_custom_call.1} parent=5 // pred_region
      %s276 = ssub.s32 %s16, 1
      // Predicated region
      $region13: #{tpu_custom_call.1} parent=11 // pred_check
        %p277 = pneg %p89
      $region14: #{tpu_custom_call.1} parent=11 // pred_check_branch
        %279 = sbr.rel (%p277) target = $region16
      $region15: #{tpu_custom_call.1} parent=11 // pred_region
        _
      $region16: #{tpu_custom_call.1} parent=11 // pred_fallthru
        _
      // Predicated region
      $region17: #{tpu_custom_call.1} parent=11 // pred_check
        %p280 = pneg %p110
      $region18: #{tpu_custom_call.1} parent=11 // pred_check_branch
        %282 = sbr.rel (%p280) target = $region20
      $region19: #{tpu_custom_call.1} parent=11 // pred_region
        _
      $region20: #{tpu_custom_call.1} parent=11 // pred_fallthru
        _
      // Predicated region
      $region21: #{tpu_custom_call.1} parent=11 // pred_check
        %p283 = pneg %p131
      $region22: #{tpu_custom_call.1} parent=11 // pred_check_branch
        %285 = sbr.rel (%p283) target = $region24
      $region23: #{tpu_custom_call.1} parent=11 // pred_region
        _
      $region24: #{tpu_custom_call.1} parent=11 // pred_fallthru
        _
      // Predicated region
      $region25: #{tpu_custom_call.1} parent=11 // pred_check
        %p286 = pneg %p152
      $region26: #{tpu_custom_call.1} parent=11 // pred_check_branch
        %288 = sbr.rel (%p286) target = $region28
      $region27: #{tpu_custom_call.1} parent=11 // pred_region
        _
      $region28: #{tpu_custom_call.1} parent=11 // pred_fallthru
        _
      // Predicated region
      $region29: #{tpu_custom_call.1} parent=11 // pred_check
        %p289 = pneg %p173
      $region30: #{tpu_custom_call.1} parent=11 // pred_check_branch
        %291 = sbr.rel (%p289) target = $region32
      $region31: #{tpu_custom_call.1} parent=11 // pred_region
        _
      $region32: #{tpu_custom_call.1} parent=11 // pred_fallthru
        _
      // Predicated region
      $region33: #{tpu_custom_call.1} parent=11 // pred_check
        %p292 = pneg %p194
      $region34: #{tpu_custom_call.1} parent=11 // pred_check_branch
        %294 = sbr.rel (%p292) target = $region36
      $region35: #{tpu_custom_call.1} parent=11 // pred_region
        _
      $region36: #{tpu_custom_call.1} parent=11 // pred_fallthru
        _
      // Predicated region
      $region37: #{tpu_custom_call.1} parent=11 // pred_check
        %p295 = pneg %p215
      $region38: #{tpu_custom_call.1} parent=11 // pred_check_branch
        %297 = sbr.rel (%p295) target = $region40
      $region39: #{tpu_custom_call.1} parent=11 // pred_region
        _
      $region40: #{tpu_custom_call.1} parent=11 // pred_fallthru
        _
      // Predicated region
      $region41: #{tpu_custom_call.1} parent=11 // pred_check
        %p298 = pneg %p236
      $region42: #{tpu_custom_call.1} parent=11 // pred_check_branch
        %300 = sbr.rel (%p298) target = $region44
      $region43: #{tpu_custom_call.1} parent=11 // pred_region
        _
      $region44: #{tpu_custom_call.1} parent=11 // pred_fallthru
        _
    $region12: #{tpu_custom_call.1} parent=5 // pred_fallthru
      _
    %p301 = scmp.lt.s32.totalorder %s16, 2
    // Predicated region
    $region45: #{tpu_custom_call.1} parent=5 // pred_check
      %p302 = pneg %p301
    $region46: #{tpu_custom_call.1} parent=5 // pred_check_branch
      %304 = sbr.rel (%p302) target = $region48
    $region47: #{tpu_custom_call.1} parent=5 // pred_region
      // Predicated region
      $region49: #{tpu_custom_call.1} parent=47 // pred_check
        %p305 = pneg %p36
      $region50: #{tpu_custom_call.1} parent=47 // pred_check_branch
        %307 = sbr.rel (%p305) target = $region52
      $region51: #{tpu_custom_call.1} parent=47 // pred_region
        %p308 = scmp.lt.s32.totalorder %s16, 1
        %s309 = scalar_select %p308, %s16, 1
        %s310 = smul.addr %s309, 5
        %s311 = smul.addr %s310, 4
        %s312 = scalar_lea.vmem %s0, %s311
      $region52: #{tpu_custom_call.1} parent=47 // pred_fallthru
        _
      // Predicated region
      $region53: #{tpu_custom_call.1} parent=47 // pred_check
        %p313 = pneg %p62
      $region54: #{tpu_custom_call.1} parent=47 // pred_check_branch
        %315 = sbr.rel (%p313) target = $region56
      $region55: #{tpu_custom_call.1} parent=47 // pred_region
        %p316 = scmp.lt.s32.totalorder %s16, 1
        %s317 = scalar_select %p316, %s16, 1
        %s318 = smul.addr %s317, 5
        %s319 = smul.addr %s318, 4
        %s320 = scalar_lea.vmem %s1, %s319
      $region56: #{tpu_custom_call.1} parent=47 // pred_fallthru
        _
    $region48: #{tpu_custom_call.1} parent=5 // pred_fallthru
      _
    %p321 = scmp.le.s32.totalorder 1, %s16
    %p322 = scmp.lt.s32.totalorder %s16, 3
    %p323 = pnand %p321, %p322
    %p324 = pneg %p323
    // Predicated region
    $region57: #{tpu_custom_call.1} parent=5 // pred_check
      _
    $region58: #{tpu_custom_call.1} parent=5 // pred_check_branch
      %326 = sbr.rel (%p323) target = $region60
    $region59: #{tpu_custom_call.1} parent=5 // pred_region
      %s327 = ssub.s32 %s16, 1
      %p328 = scmp.lt.s32.totalorder %s21, 1
      %s329 = scalar_select %p328, %s21, 1
      %s330 = smul.addr %s329, 5
      %s331 = smul.addr %s330, 4
      %s332 = scalar_lea.vmem %s0, %s331
      %p333 = pneg %p42
      %p334 = pneg %p39
      %p335 = scmp.lt.s32.totalorder %s21, 1
      %s336 = scalar_select %p335, %s21, 1
      %s337 = smul.addr %s336, 5
      %s338 = smul.addr %s337, 4
      %s339 = scalar_lea.vmem %s1, %s338
      %p340 = pneg %p68
      %p341 = pneg %p65
      %p342 = pneg %p89
      %p343 = pneg %p86
      %p344 = pneg %p110
      %p345 = pneg %p107
      %p346 = pneg %p131
      %p347 = pneg %p128
      %p348 = pneg %p152
      %p349 = pneg %p149
      %p350 = pneg %p173
      %p351 = pneg %p170
      %p352 = pneg %p194
      %p353 = pneg %p191
      %p354 = pneg %p215
      %p355 = pneg %p212
      %p356 = pneg %p236
      %p357 = pneg %p233
      %p358 = pneg %p262
      %p359 = pneg %p259
      %p360 = scmp.lt.s32.totalorder %s21, 1
      %s361 = scalar_select %p360, %s21, 1
      %s362 = smul.addr %s361, 2
      %s363 = smul.addr %s362, 8
      %s364 = scalar_lea.vmem %s10, %s363
      %p365 = scmp.lt.s32.totalorder %s21, 1
      %s366 = scalar_select %p365, %s21, 1
      %s367 = smul.addr %s366, 5
      %s368 = smul.addr %s367, 4
      %s369 = scalar_lea.vmem %s0, %s368
      %p370 = scmp.lt.s32.totalorder %s21, 1
      %s371 = scalar_select %p370, %s21, 1
      %s372 = smul.addr %s371, 5
      %s373 = smul.addr %s372, 4
      %s374 = scalar_lea.vmem %s1, %s373
      %p375 = scmp.lt.s32.totalorder %s21, 1
      %s376 = scalar_select %p375, %s21, 1
      %s377 = smul.addr %s376, 2
      %s378 = smul.addr %s377, 8
      %s379 = scalar_lea.vmem %s10, %s378
      %v381 = vld [vmem:[%s4] sm:$0x3]
      %v382 = vld [vmem:[%s369] sm:$0xf]
      %v383 = vld [vmem:[%s369 + $0x4] sm:$0xf]
      %v384 = vld [vmem:[%s369 + $0x8] sm:$0xf]
      %v385 = vld [vmem:[%s369 + $0xc] sm:$0xf]
      %v386 = vld [vmem:[%s369 + $0x10] sm:$0x3]
      %v387 = vld [vmem:[%s7] sm:$0xf]
      %389 = vset.pattern.permute.xlu0 0
      %390 = vperm.xlu0 %389, %v387
      %v391 = vpop.permute.xlu0 %390
      %v398 = vunpack.c.l.b16 %v382
      %v399 = vunpack.c.l.b16 %v383
      %v400 = vunpack.c.l.b16 %v384
      %v401 = vunpack.c.l.b16 %v385
      %v402 = vunpack.c.l.b16 %v386
      %v403 = vpack.c.b16 %v399, %v398
      %v404 = vpack.c.b16 %v401, %v400
      %v405 = vpack.c.b16 %v402, %v402
      %vm408 = vcmask 293888
      %v410 = vsel %vm408, %v381, 0
      %vm412 = vcmask 1041408
      %v414 = vsel %vm412, %v405, 0
      %416 = vmatprep.subr.bf16.mxu0 0
      %417 = vmatpush1.bf16.msra.mxu0 0
      %418 = vmatprep.subr.bf16.mxu0 0
      %419 = vmatpush1.bf16.msra.mxu0 0
      %420 = vmatprep.subr.bf16.mxu0 0
      %421 = vmatpush1.bf16.msra.mxu0 0
      %422 = vmatprep.subr.bf16.mxu0 0
      %423 = vmatpush1.bf16.msra.mxu0 0
      %424 = vmatprep.subr.bf16.mxu0 0
      %425 = vmatpush1.bf16.msra.mxu0 0
      %426 = vmatprep.subr.bf16.mxu0 0
      %427 = vmatpush1.bf16.msra.mxu0 %v414
      %428 = vmatprep.subr.bf16.mxu0 0
      %429 = vmatpush1.bf16.msra.mxu0 %v404
      %430 = vmatprep.subr.bf16.mxu0 0
      %431 = vmatpush1.bf16.msra.mxu0 %v403
      %432 = vmatprep.subr.bf16.mxu0 0
      %433 = vmatpush2.bf16.msra.mxu0 0
      %434 = vmatprep.subr.bf16.mxu0 0
      %435 = vmatpush2.bf16.msra.mxu0 0
      %436 = vmatprep.subr.bf16.mxu0 0
      %437 = vmatpush2.bf16.msra.mxu0 0
      %438 = vmatprep.subr.bf16.mxu0 0
      %439 = vmatpush2.bf16.msra.mxu0 0
      %440 = vmatprep.subr.bf16.mxu0 0
      %441 = vmatpush2.bf16.msra.mxu0 0
      %442 = vmatprep.subr.bf16.mxu0 0
      %443 = vmatpush2.bf16.msra.mxu0 0
      %444 = vmatprep.subr.bf16.mxu0 0
      %445 = vmatpush2.bf16.msra.mxu0 0
      %446 = vmatprep.subr.bf16.mxu0 0
      %447 = vmatpush2.bf16.msra.mxu0 0
      %448 = vmatprep.mubr.bf16.mxu0 0
      %449 = vmatmul.mubr.bf16.gmra.mxu0 %v410
      %v450 = vpop.f32.mrf.mxu0
      %v451 = vadd.f32 %v391, %v450
      %v452 = vpop.f32.mrf.mxu0
      %v453 = vpop.f32.mrf.mxu0
      %v454 = vpop.f32.mrf.mxu0
      %455 = vdwg.mxu0
      %v456 = vmax.f32 %v451, 0.0
      %v457 = vld [vmem:[%s6] sm:$0x3]
      %v458 = vld [vmem:[%s374] sm:$0xf]
      %v459 = vld [vmem:[%s374 + $0x4] sm:$0xf]
      %v460 = vld [vmem:[%s374 + $0x8] sm:$0xf]
      %v461 = vld [vmem:[%s374 + $0xc] sm:$0xf]
      %v462 = vld [vmem:[%s374 + $0x10] sm:$0x3]
      %v463 = vld [vmem:[%s9] sm:$0xf]
      %465 = vset.pattern.permute.xlu0 0
      %466 = vperm.xlu0 %465, %v463
      %v467 = vpop.permute.xlu0 %466
      %v474 = vunpack.c.l.b16 %v458
      %v475 = vunpack.c.l.b16 %v459
      %v476 = vunpack.c.l.b16 %v460
      %v477 = vunpack.c.l.b16 %v461
      %v478 = vunpack.c.l.b16 %v462
      %v479 = vpack.c.b16 %v475, %v474
      %v480 = vpack.c.b16 %v477, %v476
      %v481 = vpack.c.b16 %v478, %v478
      %v485 = vsel %vm408, %v457, 0
      %v488 = vsel %vm412, %v481, 0
      %490 = vmatprep.subr.bf16.mxu0 0
      %491 = vmatpush1.bf16.msra.mxu0 0
      %492 = vmatprep.subr.bf16.mxu0 0
      %493 = vmatpush1.bf16.msra.mxu0 0
      %494 = vmatprep.subr.bf16.mxu0 0
      %495 = vmatpush1.bf16.msra.mxu0 0
      %496 = vmatprep.subr.bf16.mxu0 0
      %497 = vmatpush1.bf16.msra.mxu0 0
      %498 = vmatprep.subr.bf16.mxu0 0
      %499 = vmatpush1.bf16.msra.mxu0 0
      %500 = vmatprep.subr.bf16.mxu0 0
      %501 = vmatpush1.bf16.msra.mxu0 %v488
      %502 = vmatprep.subr.bf16.mxu0 0
      %503 = vmatpush1.bf16.msra.mxu0 %v480
      %504 = vmatprep.subr.bf16.mxu0 0
      %505 = vmatpush1.bf16.msra.mxu0 %v479
      %506 = vmatprep.subr.bf16.mxu0 0
      %507 = vmatpush2.bf16.msra.mxu0 0
      %508 = vmatprep.subr.bf16.mxu0 0
      %509 = vmatpush2.bf16.msra.mxu0 0
      %510 = vmatprep.subr.bf16.mxu0 0
      %511 = vmatpush2.bf16.msra.mxu0 0
      %512 = vmatprep.subr.bf16.mxu0 0
      %513 = vmatpush2.bf16.msra.mxu0 0
      %514 = vmatprep.subr.bf16.mxu0 0
      %515 = vmatpush2.bf16.msra.mxu0 0
      %516 = vmatprep.subr.bf16.mxu0 0
      %517 = vmatpush2.bf16.msra.mxu0 0
      %518 = vmatprep.subr.bf16.mxu0 0
      %519 = vmatpush2.bf16.msra.mxu0 0
      %520 = vmatprep.subr.bf16.mxu0 0
      %521 = vmatpush2.bf16.msra.mxu0 0
      %522 = vmatprep.mubr.bf16.mxu0 0
      %523 = vmatmul.mubr.bf16.gmra.mxu0 %v485
      %v524 = vpop.f32.mrf.mxu0
      %v525 = vadd.f32 %v467, %v524
      %v526 = vpop.f32.mrf.mxu0
      %v527 = vpop.f32.mrf.mxu0
      %v528 = vpop.f32.mrf.mxu0
      %529 = vdwg.mxu0
      %v530 = vmax.f32 %v525, 0.0
      %v531 = vld [vmem:[%s2] sm:$0xf]
      %v532 = vld [vmem:[%s2 + $0x4] sm:$0xf]
      %v533 = vld [vmem:[%s2 + $0x8] sm:$0xf]
      %v534 = vld [vmem:[%s2 + $0xc] sm:$0xf]
      %v535 = vld [vmem:[%s2 + $0x10] sm:$0xf]
      %v536 = vld [vmem:[%s2 + $0x14] sm:$0xf]
      %v537 = vld [vmem:[%s2 + $0x18] sm:$0xf]
      %v538 = vld [vmem:[%s2 + $0x1c] sm:$0xf]
      %v547 = vunpack.c.l.b16 %v531
      %v548 = vunpack.c.l.b16 %v532
      %v549 = vunpack.c.l.b16 %v533
      %v550 = vunpack.c.l.b16 %v534
      %v551 = vunpack.c.l.b16 %v535
      %v552 = vunpack.c.l.b16 %v536
      %v553 = vunpack.c.l.b16 %v537
      %v554 = vunpack.c.l.b16 %v538
      %v555 = vpack.c.b16 %v548, %v547
      %v556 = vpack.c.b16 %v550, %v549
      %v557 = vpack.c.b16 %v552, %v551
      %v558 = vpack.c.b16 %v554, %v553
      %vm563 = vcmask 523264
      %v565 = vsel %vm563, %v456, 0
      %567 = vmatprep.subr.bf16.mxu0 0
      %568 = vmatpush1.bf16.msra.mxu0 0
      %569 = vmatprep.subr.bf16.mxu0 0
      %570 = vmatpush1.bf16.msra.mxu0 0
      %571 = vmatprep.subr.bf16.mxu0 0
      %572 = vmatpush1.bf16.msra.mxu0 0
      %573 = vmatprep.subr.bf16.mxu0 0
      %574 = vmatpush1.bf16.msra.mxu0 0
      %575 = vmatprep.subr.bf16.mxu0 0
      %576 = vmatpush1.bf16.msra.mxu0 %v558
      %577 = vmatprep.subr.bf16.mxu0 0
      %578 = vmatpush1.bf16.msra.mxu0 %v557
      %579 = vmatprep.subr.bf16.mxu0 0
      %580 = vmatpush1.bf16.msra.mxu0 %v556
      %581 = vmatprep.subr.bf16.mxu0 0
      %582 = vmatpush1.bf16.msra.mxu0 %v555
      %583 = vmatprep.subr.bf16.mxu0 0
      %584 = vmatpush2.bf16.msra.mxu0 0
      %585 = vmatprep.subr.bf16.mxu0 0
      %586 = vmatpush2.bf16.msra.mxu0 0
      %587 = vmatprep.subr.bf16.mxu0 0
      %588 = vmatpush2.bf16.msra.mxu0 0
      %589 = vmatprep.subr.bf16.mxu0 0
      %590 = vmatpush2.bf16.msra.mxu0 0
      %591 = vmatprep.subr.bf16.mxu0 0
      %592 = vmatpush2.bf16.msra.mxu0 0
      %593 = vmatprep.subr.bf16.mxu0 0
      %594 = vmatpush2.bf16.msra.mxu0 0
      %595 = vmatprep.subr.bf16.mxu0 0
      %596 = vmatpush2.bf16.msra.mxu0 0
      %597 = vmatprep.subr.bf16.mxu0 0
      %598 = vmatpush2.bf16.msra.mxu0 0
      %599 = vmatprep.mubr.f32.mxu0 0.0
      %600 = vmatmul.mubr.f32.gmra.mxu0 %v565
      %v601 = vpop.f32.mrf.mxu0
      %v602 = vadd.f32 0.0, %v601
      %v603 = vpop.f32.mrf.mxu0
      %604 = vdwg.mxu0
      %v606 = vrot.slane %v602, 4
      %607 = vrot.lane.b32.xlu0 %v606, 124
      %v608 = vpop.permute.xlu0 %607
      %610 = vrot.lane.b32.xlu0 %v602, 120
      %v611 = vpop.permute.xlu0 %610
      %613 = vrot.lane.b32.xlu0 %v606, 116
      %v614 = vpop.permute.xlu0 %613
      %616 = vrot.lane.b32.xlu0 %v602, 112
      %v617 = vpop.permute.xlu0 %616
      %619 = vrot.lane.b32.xlu0 %v606, 108
      %v620 = vpop.permute.xlu0 %619
      %622 = vrot.lane.b32.xlu0 %v602, 104
      %v623 = vpop.permute.xlu0 %622
      %625 = vrot.lane.b32.xlu0 %v606, 100
      %v626 = vpop.permute.xlu0 %625
      %628 = vrot.lane.b32.xlu0 %v602, 96
      %v629 = vpop.permute.xlu0 %628
      %vm630 = vcmask 1043456
      %v631 = vsel %vm630, %v602, %v608
      %v632 = vsel %vm630, %v611, %v614
      %v633 = vsel %vm630, %v617, %v620
      %v634 = vsel %vm630, %v623, %v626
      %v635 = vld [vmem:[%s5] sm:$0x3]
      %v636 = vld [vmem:[%s8] sm:$0xf]
      %638 = vset.pattern.permute.xlu0 0
      %639 = vperm.xlu0 %638, %v636
      %v640 = vpop.permute.xlu0 %639
      %v643 = vsel %vm408, %v635, 0
      %v645 = vsel %vm630, %v629, 0
      %647 = vmatprep.subr.mxu0 0.0
      %648 = vmatpush1.msra.mxu0 0.0
      %649 = vmatprep.subr.mxu0 0.0
      %650 = vmatpush1.msra.mxu0 0.0
      %651 = vmatprep.subr.mxu0 0.0
      %652 = vmatpush1.msra.mxu0 0.0
      %653 = vmatprep.subr.mxu0 0.0
      %654 = vmatpush1.msra.mxu0 0.0
      %655 = vmatprep.subr.mxu0 0.0
      %656 = vmatpush1.msra.mxu0 0.0
      %657 = vmatprep.subr.mxu0 0.0
      %658 = vmatpush1.msra.mxu0 0.0
      %659 = vmatprep.subr.mxu0 0.0
      %660 = vmatpush1.msra.mxu0 0.0
      %661 = vmatprep.subr.mxu0 0.0
      %662 = vmatpush1.msra.mxu0 0.0
      %663 = vmatprep.subr.mxu0 0.0
      %664 = vmatpush1.msra.mxu0 0.0
      %665 = vmatprep.subr.mxu0 0.0
      %666 = vmatpush1.msra.mxu0 0.0
      %667 = vmatprep.subr.mxu0 0.0
      %668 = vmatpush1.msra.mxu0 0.0
      %669 = vmatprep.subr.mxu0 0.0
      %670 = vmatpush1.msra.mxu0 %v645
      %671 = vmatprep.subr.mxu0 0.0
      %672 = vmatpush1.msra.mxu0 %v634
      %673 = vmatprep.subr.mxu0 0.0
      %674 = vmatpush1.msra.mxu0 %v633
      %675 = vmatprep.subr.mxu0 0.0
      %676 = vmatpush1.msra.mxu0 %v632
      %677 = vmatprep.subr.mxu0 0.0
      %678 = vmatpush1.msra.mxu0 %v631
      %679 = vmatprep.subr.mxu0 0.0
      %680 = vmatpush2.msra.mxu0 0.0
      %681 = vmatprep.subr.mxu0 0.0
      %682 = vmatpush2.msra.mxu0 0.0
      %683 = vmatprep.subr.mxu0 0.0
      %684 = vmatpush2.msra.mxu0 0.0
      %685 = vmatprep.subr.mxu0 0.0
      %686 = vmatpush2.msra.mxu0 0.0
      %687 = vmatprep.subr.mxu0 0.0
      %688 = vmatpush2.msra.mxu0 0.0
      %689 = vmatprep.subr.mxu0 0.0
      %690 = vmatpush2.msra.mxu0 0.0
      %691 = vmatprep.subr.mxu0 0.0
      %692 = vmatpush2.msra.mxu0 0.0
      %693 = vmatprep.subr.mxu0 0.0
      %694 = vmatpush2.msra.mxu0 0.0
      %695 = vmatprep.subr.mxu0 0.0
      %696 = vmatpush2.msra.mxu0 0.0
      %697 = vmatprep.subr.mxu0 0.0
      %698 = vmatpush2.msra.mxu0 0.0
      %699 = vmatprep.subr.mxu0 0.0
      %700 = vmatpush2.msra.mxu0 0.0
      %701 = vmatprep.subr.mxu0 0.0
      %702 = vmatpush2.msra.mxu0 0.0
      %703 = vmatprep.subr.mxu0 0.0
      %704 = vmatpush2.msra.mxu0 0.0
      %705 = vmatprep.subr.mxu0 0.0
      %706 = vmatpush2.msra.mxu0 0.0
      %707 = vmatprep.subr.mxu0 0.0
      %708 = vmatpush2.msra.mxu0 0.0
      %709 = vmatprep.subr.mxu0 0.0
      %710 = vmatpush2.msra.mxu0 0.0
      %711 = vmatprep.mubr.bf16.mxu0 0
      %712 = vmatmul.mubr.bf16.gmra.mxu0 %v643
      %v713 = vpop.f32.mrf.mxu0
      %v714 = vadd.f32 %v640, %v713
      %v715 = vpop.f32.mrf.mxu0
      %v716 = vpop.f32.mrf.mxu0
      %v717 = vpop.f32.mrf.mxu0
      %718 = vdwg.mxu0
      %v719 = vmax.f32 %v714, 0.0
      %v720 = vld [vmem:[%s3] sm:$0x3]
      %vm721 = vcmask 31744
      %v723 = vsel %vm721, %v719, 0
      %v726 = vsel %vm412, %v720, 0
      %728 = vmatprep.subr.bf16.mxu0 0
      %729 = vmatpush1.bf16.msra.mxu0 0
      %730 = vmatprep.subr.bf16.mxu0 0
      %731 = vmatpush1.bf16.msra.mxu0 0
      %732 = vmatprep.subr.bf16.mxu0 0
      %733 = vmatpush1.bf16.msra.mxu0 0
      %734 = vmatprep.subr.bf16.mxu0 0
      %735 = vmatpush1.bf16.msra.mxu0 0
      %736 = vmatprep.subr.bf16.mxu0 0
      %737 = vmatpush1.bf16.msra.mxu0 0
      %738 = vmatprep.subr.bf16.mxu0 0
      %739 = vmatpush1.bf16.msra.mxu0 0
      %740 = vmatprep.subr.bf16.mxu0 0
      %741 = vmatpush1.bf16.msra.mxu0 0
      %742 = vmatprep.subr.bf16.mxu0 0
      %743 = vmatpush1.bf16.msra.mxu0 %v726
      %744 = vmatprep.subr.bf16.mxu0 0
      %745 = vmatpush2.bf16.msra.mxu0 0
      %746 = vmatprep.subr.bf16.mxu0 0
      %747 = vmatpush2.bf16.msra.mxu0 0
      %748 = vmatprep.subr.bf16.mxu0 0
      %749 = vmatpush2.bf16.msra.mxu0 0
      %750 = vmatprep.subr.bf16.mxu0 0
      %751 = vmatpush2.bf16.msra.mxu0 0
      %752 = vmatprep.subr.bf16.mxu0 0
      %753 = vmatpush2.bf16.msra.mxu0 0
      %754 = vmatprep.subr.bf16.mxu0 0
      %755 = vmatpush2.bf16.msra.mxu0 0
      %756 = vmatprep.subr.bf16.mxu0 0
      %757 = vmatpush2.bf16.msra.mxu0 0
      %758 = vmatprep.subr.bf16.mxu0 0
      %759 = vmatpush2.bf16.msra.mxu0 0
      %760 = vmatprep.mubr.f32.mxu0 0.0
      %761 = vmatmul.mubr.f32.gmra.mxu0 %v723
      %v762 = vpop.f32.mrf.mxu0
      %v763 = vadd.f32 0.0, %v762
      %v764 = vpop.f32.mrf.mxu0
      %765 = vdwg.mxu0
      %v767 = vsel %vm721, %v530, 0
      %769 = vmatprep.subr.bf16.mxu0 0
      %770 = vmatpush1.bf16.msra.mxu0 0
      %771 = vmatprep.subr.bf16.mxu0 0
      %772 = vmatpush1.bf16.msra.mxu0 0
      %773 = vmatprep.subr.bf16.mxu0 0
      %774 = vmatpush1.bf16.msra.mxu0 0
      %775 = vmatprep.subr.bf16.mxu0 0
      %776 = vmatpush1.bf16.msra.mxu0 0
      %777 = vmatprep.subr.bf16.mxu0 0
      %778 = vmatpush1.bf16.msra.mxu0 0
      %779 = vmatprep.subr.bf16.mxu0 0
      %780 = vmatpush1.bf16.msra.mxu0 0
      %781 = vmatprep.subr.bf16.mxu0 0
      %782 = vmatpush1.bf16.msra.mxu0 0
      %783 = vmatprep.subr.bf16.mxu0 0
      %784 = vmatpush1.bf16.msra.mxu0 %v726
      %785 = vmatprep.subr.bf16.mxu0 0
      %786 = vmatpush2.bf16.msra.mxu0 0
      %787 = vmatprep.subr.bf16.mxu0 0
      %788 = vmatpush2.bf16.msra.mxu0 0
      %789 = vmatprep.subr.bf16.mxu0 0
      %790 = vmatpush2.bf16.msra.mxu0 0
      %791 = vmatprep.subr.bf16.mxu0 0
      %792 = vmatpush2.bf16.msra.mxu0 0
      %793 = vmatprep.subr.bf16.mxu0 0
      %794 = vmatpush2.bf16.msra.mxu0 0
      %795 = vmatprep.subr.bf16.mxu0 0
      %796 = vmatpush2.bf16.msra.mxu0 0
      %797 = vmatprep.subr.bf16.mxu0 0
      %798 = vmatpush2.bf16.msra.mxu0 0
      %799 = vmatprep.subr.bf16.mxu0 0
      %800 = vmatpush2.bf16.msra.mxu0 0
      %801 = vmatprep.mubr.f32.mxu0 0.0
      %802 = vmatmul.mubr.f32.gmra.mxu0 %v767
      %v803 = vpop.f32.mrf.mxu0
      %v804 = vadd.f32 0.0, %v803
      %v805 = vpop.f32.mrf.mxu0
      %806 = vdwg.mxu0
      %v808 = vrot.slane %v763, 4
      %v810 = vsel %vm630, %v456, %v808
      %811 = vst.msk [vmem:[%s379] sm:$0xff] %vm563, %v810
      %vm812 = vcmask 519168
      %813 = vst.msk [vmem:[%s379 + $0x8] sm:$0xf] %vm812, %v804
      %p814 = scmp.lt.s32.totalorder %s21, 1
      %s815 = scalar_select %p814, %s21, 1
      %s816 = smul.addr %s815, 2
      %s817 = smul.addr %s816, 8
      %s818 = scalar_lea.vmem %s10, %s817
      // Predicated region
      $region61: #{tpu_custom_call.1} parent=59 // pred_check
        %p819 = pneg %p259
      $region62: #{tpu_custom_call.1} parent=59 // pred_check_branch
        %821 = sbr.rel (%p819) target = $region64
      $region63: #{tpu_custom_call.1} parent=59 // pred_region
        _
      $region64: #{tpu_custom_call.1} parent=59 // pred_fallthru
        _
    $region60: #{tpu_custom_call.1} parent=5 // pred_fallthru
      _
    %p822 = scmp.le.s32.totalorder 2, %s16
    // Predicated region
    $region65: #{tpu_custom_call.1} parent=5 // pred_check
      %p823 = pneg %p822
    $region66: #{tpu_custom_call.1} parent=5 // pred_check_branch
      %825 = sbr.rel (%p823) target = $region68
    $region67: #{tpu_custom_call.1} parent=5 // pred_region
      %s826 = ssub.s32 %s16, 2
      // Predicated region
      $region69: #{tpu_custom_call.1} parent=67 // pred_check
        %p827 = pneg %p265
      $region70: #{tpu_custom_call.1} parent=67 // pred_check_branch
        %829 = sbr.rel (%p827) target = $region72
      $region71: #{tpu_custom_call.1} parent=67 // pred_region
        %p830 = scmp.lt.s32.totalorder %s22, 1
        %s831 = scalar_select %p830, %s22, 1
        %s832 = smul.addr %s831, 2
        %s833 = smul.addr %s832, 8
        %s834 = scalar_lea.vmem %s10, %s833
      $region72: #{tpu_custom_call.1} parent=67 // pred_fallthru
        _
    $region68: #{tpu_custom_call.1} parent=5 // pred_fallthru
      _
  $region6: #{tpu_custom_call.1} parent=0 // loop_footer
    %s20 = sadd.s32 1, %s16
  $region7: #{tpu_custom_call.1} parent=0 // loop_footer_branch
    %15 = sbr.rel target = $region3
  $region8: #{tpu_custom_call.1} parent=0 // loop_exit
    _

</llo_original>
